<compile_context>
chip_gen: v7x
topology: tpu7x:2x2x1
jax: 0.10.0
libtpu: 0.0.40
codegen_flags: <defaults>
</compile_context>

<pallas_src>
import jax
import jax.numpy as jnp
import numpy as np
from jax import lax
from jax.experimental import pallas as pl
from jax.experimental.pallas import tpu as pltpu

EPS = 1e-5


def _hardswish(x):
    # nn.Hardswish: x * relu6(x + 3) / 6
    return x * jnp.clip(x + 3.0, 0.0, 6.0) * (1.0 / 6.0)


# ----------------------------------------------------------------------------
# Fused StockMixing kernel (single program, whole problem in VMEM)
# ----------------------------------------------------------------------------
def _stock_mixing_kernel(x_ref, g_ref, b_ref, m1_ref, m2_ref,
                         wa_ref, wb_ref, bias_ref, o_ref):
    x = x_ref[...]                                            # (N, D)

    # LayerNorm with normalized_shape=(N, D): stats over the entire matrix,
    # elementwise affine with (N, D) gamma/beta.
    mu = jnp.mean(x, keepdims=True)                           # (1, 1)
    var = jnp.mean((x - mu) ** 2, keepdims=True)              # (1, 1)
    xn = (x - mu) * lax.rsqrt(var + EPS) * g_ref[...] + b_ref[...]

    # M1 @ h -> hardswish -> M2 @ h   (default MXU precision, f32 accumulate)
    h = jnp.dot(m1_ref[...], xn, preferred_element_type=jnp.float32)   # (M, D)
    h = _hardswish(h)
    h = jnp.dot(m2_ref[...], h, preferred_element_type=jnp.float32)    # (N, D)
    out = x + h

    # fc on concat([x, out], dim=1)  ==  sum_d(x*Wa_row + out*Wb_row) + bias.
    # VPU multiply-add + one XLU lane reduce (avoids two 1-wide MXU matmuls).
    o_ref[...] = (jnp.sum(x * wa_ref[...] + out * wb_ref[...],
                          axis=-1, keepdims=True)
                  + bias_ref[0])                              # (N, 1)


def stock_mixing_forward(x, params):
    N, D = x.shape
    M = params["M1"].shape[0]
    return pl.pallas_call(
        _stock_mixing_kernel,
        out_shape=jax.ShapeDtypeStruct((N, 1), jnp.float32),
        grid=(1,),
        in_specs=[
            pl.BlockSpec((N, D), lambda i: (0, 0)),    # x
            pl.BlockSpec((N, D), lambda i: (0, 0)),    # LayerNorm gamma
            pl.BlockSpec((N, D), lambda i: (0, 0)),    # LayerNorm beta
            pl.BlockSpec((M, N), lambda i: (0, 0)),    # M1
            pl.BlockSpec((N, M), lambda i: (0, 0)),    # M2
            pl.BlockSpec((1, D), lambda i: (0, 0)),    # fc weight row, first half  (for x)
            pl.BlockSpec((1, D), lambda i: (0, 0)),    # fc weight row, second half (for out)
            pl.BlockSpec(memory_space=pltpu.MemorySpace.SMEM),  # fc bias (scalar)
        ],
        out_specs=pl.BlockSpec((N, 1), lambda i: (0, 0)),
        compiler_params=pltpu.CompilerParams(
            dimension_semantics=("arbitrary",)),
    )(x, params["ln_g"], params["ln_b"], params["M1"], params["M2"],
      params["wa"], params["wb"], params["bias"])


# ----------------------------------------------------------------------------
# Deterministic parameter construction (shapes follow StockMixing.__init__)
# ----------------------------------------------------------------------------
def init_params(key, market_dim, stock_num, mix_dim):
    k1, k2, k3, k4 = jax.random.split(key, 4)
    bound = 1.0 / np.sqrt(2.0 * mix_dim)                     # nn.Linear default init
    fc_w = jax.random.uniform(k3, (1, 2 * mix_dim), jnp.float32, -bound, bound)
    fc_b = jax.random.uniform(k4, (1,), jnp.float32, -bound, bound)
    return {
        "ln_g": jnp.ones((stock_num, mix_dim), jnp.float32),   # LayerNorm weight
        "ln_b": jnp.zeros((stock_num, mix_dim), jnp.float32),  # LayerNorm bias
        "M1": jax.random.normal(k1, (market_dim, stock_num), jnp.float32),
        "M2": jax.random.normal(k2, (stock_num, market_dim), jnp.float32),
        "wa": fc_w[:, :mix_dim],                               # (1, D)  row form
        "wb": fc_w[:, mix_dim:],                               # (1, D)  row form
        "bias": fc_b,                                          # (1,)
    }


# ----------------------------------------------------------------------------
# Pure-JAX reference (full-f32 matmuls) for a sanity check
# ----------------------------------------------------------------------------
def reference_forward(x, p):
    HIGH = jax.lax.Precision.HIGHEST
    mu = x.mean()
    var = ((x - mu) ** 2).mean()
    xn = (x - mu) * lax.rsqrt(var + EPS) * p["ln_g"] + p["ln_b"]
    h = jnp.dot(p["M1"], xn, precision=HIGH)
    h = _hardswish(h)
    h = jnp.dot(p["M2"], h, precision=HIGH)
    out = x + h
    return (jnp.dot(x, p["wa"].T, precision=HIGH)
            + jnp.dot(out, p["wb"].T, precision=HIGH)
            + p["bias"][0])


if __name__ == "__main__":
    market_dim, stock_num, mix_dim = 4, 16, 12

    key = jax.random.PRNGKey(0)
    kx, kp = jax.random.split(key)
    x = jax.random.normal(kx, (stock_num, mix_dim), jnp.float32)
    params = init_params(kp, market_dim, stock_num, mix_dim)

    out = jax.block_until_ready(stock_mixing_forward(x, params))
    assert out.shape == (stock_num, 1), out.shape

    ref = jax.block_until_ready(reference_forward(x, params))
    out_np, ref_np = np.asarray(out), np.asarray(ref)
    assert np.all(np.isfinite(out_np))
    # Relative-to-scale error; covers default MXU precision vs the f32 reference.
    rel_err = np.max(np.abs(out_np - ref_np)) / (np.max(np.abs(ref_np)) + 1e-6)
    if rel_err > 2e-2:
        raise AssertionError(f"mismatch: relative error {rel_err}")

    print("KERNEL_OK")
</pallas_src>

<mosaic_0001>
module attributes {stable_mosaic.version = 11 : i64} {
  func.func @_stock_mixing_kernel(%arg0: i32, %arg1: memref<16x12xf32, #tpu.memory_space<vmem>>, %arg2: memref<16x12xf32, #tpu.memory_space<vmem>>, %arg3: memref<16x12xf32, #tpu.memory_space<vmem>>, %arg4: memref<4x16xf32, #tpu.memory_space<vmem>>, %arg5: memref<16x4xf32, #tpu.memory_space<vmem>>, %arg6: memref<1x12xf32, #tpu.memory_space<vmem>>, %arg7: memref<1x12xf32, #tpu.memory_space<vmem>>, %arg8: memref<1xf32, #tpu.memory_space<smem>>, %arg9: memref<16x1xf32, #tpu.memory_space<vmem>>) attributes {dimension_semantics = [#tpu.dimension_semantics<arbitrary>], iteration_bounds = array<i64: 1>, scalar_prefetch = 0 : i64, scratch_operands = 0 : i64, tpu.core_type = #tpu.core_type<tc>, window_params = [{pipeline_mode = #tpu.pipeline_mode<synchronous>, transform_indices = @transform_0, window_bounds = array<i64: 16, 12>}, {pipeline_mode = #tpu.pipeline_mode<synchronous>, transform_indices = @transform_1, window_bounds = array<i64: 16, 12>}, {pipeline_mode = #tpu.pipeline_mode<synchronous>, transform_indices = @transform_2, window_bounds = array<i64: 16, 12>}, {pipeline_mode = #tpu.pipeline_mode<synchronous>, transform_indices = @transform_3, window_bounds = array<i64: 4, 16>}, {pipeline_mode = #tpu.pipeline_mode<synchronous>, transform_indices = @transform_4, window_bounds = array<i64: 16, 4>}, {pipeline_mode = #tpu.pipeline_mode<synchronous>, transform_indices = @transform_5, window_bounds = array<i64: 1, 12>}, {pipeline_mode = #tpu.pipeline_mode<synchronous>, transform_indices = @transform_6, window_bounds = array<i64: 1, 12>}, {transform_indices = @transform_7, window_bounds = array<i64: 1>}, {pipeline_mode = #tpu.pipeline_mode<synchronous>, transform_indices = @transform_8, window_bounds = array<i64: 16, 1>}]} {
    %c0 = arith.constant 0 : index
    %c0_0 = arith.constant 0 : index
    %0 = vector.load %arg1[%c0, %c0_0] : memref<16x12xf32, #tpu.memory_space<vmem>>, vector<16x12xf32>
    %1 = vector.shape_cast %0 : vector<16x12xf32> to vector<1x16x12xf32>
    %cst = arith.constant dense<0.000000e+00> : vector<1xf32>
    %2 = vector.multi_reduction <add>, %1, %cst [1, 2] : vector<1x16x12xf32> to vector<1xf32>
    %3 = vector.shape_cast %2 : vector<1xf32> to vector<1x1x1xf32>
    %4 = vector.extract %3[0, 0, 0] : f32 from vector<1x1x1xf32>
    %5 = vector.broadcast %4 : f32 to vector<1x1xf32>
    %cst_1 = arith.constant 1.920000e+02 : f32
    %6 = vector.broadcast %cst_1 : f32 to vector<1x1xf32>
    %7 = arith.divf %5, %6 : vector<1x1xf32>
    %8 = vector.broadcast %7 : vector<1x1xf32> to vector<16x12xf32>
    %9 = arith.subf %0, %8 : vector<16x12xf32>
    %10 = arith.mulf %9, %9 : vector<16x12xf32>
    %11 = vector.shape_cast %10 : vector<16x12xf32> to vector<1x16x12xf32>
    %cst_2 = arith.constant dense<0.000000e+00> : vector<1xf32>
    %12 = vector.multi_reduction <add>, %11, %cst_2 [1, 2] : vector<1x16x12xf32> to vector<1xf32>
    %13 = vector.shape_cast %12 : vector<1xf32> to vector<1x1x1xf32>
    %14 = vector.extract %13[0, 0, 0] : f32 from vector<1x1x1xf32>
    %15 = vector.broadcast %14 : f32 to vector<1x1xf32>
    %cst_3 = arith.constant 1.920000e+02 : f32
    %16 = vector.broadcast %cst_3 : f32 to vector<1x1xf32>
    %17 = arith.divf %15, %16 : vector<1x1xf32>
    %18 = vector.broadcast %7 : vector<1x1xf32> to vector<16x12xf32>
    %19 = arith.subf %0, %18 : vector<16x12xf32>
    %cst_4 = arith.constant 9.99999974E-6 : f32
    %20 = vector.broadcast %cst_4 : f32 to vector<1x1xf32>
    %21 = arith.addf %17, %20 : vector<1x1xf32>
    %22 = math.rsqrt %21 : vector<1x1xf32>
    %23 = vector.broadcast %22 : vector<1x1xf32> to vector<16x12xf32>
    %24 = arith.mulf %19, %23 : vector<16x12xf32>
    %c0_5 = arith.constant 0 : index
    %c0_6 = arith.constant 0 : index
    %25 = vector.load %arg2[%c0_5, %c0_6] : memref<16x12xf32, #tpu.memory_space<vmem>>, vector<16x12xf32>
    %26 = arith.mulf %24, %25 : vector<16x12xf32>
    %c0_7 = arith.constant 0 : index
    %c0_8 = arith.constant 0 : index
    %27 = vector.load %arg3[%c0_7, %c0_8] : memref<16x12xf32, #tpu.memory_space<vmem>>, vector<16x12xf32>
    %28 = arith.addf %26, %27 : vector<16x12xf32>
    %c0_9 = arith.constant 0 : index
    %c0_10 = arith.constant 0 : index
    %29 = vector.load %arg4[%c0_9, %c0_10] : memref<4x16xf32, #tpu.memory_space<vmem>>, vector<4x16xf32>
    %cst_11 = arith.constant dense<0.000000e+00> : vector<4x12xf32>
    %30 = tpu.matmul %29, %28, %cst_11 {dimension_numbers = #tpu.dot_dimension_numbers<[1], [0], [0], [1], [0, 0, 1, 1], [], []>} : vector<4x16xf32>, vector<16x12xf32>, vector<4x12xf32> -> vector<4x12xf32>
    %cst_12 = arith.constant 3.000000e+00 : f32
    %31 = vector.broadcast %cst_12 : f32 to vector<4x12xf32>
    %32 = arith.addf %30, %31 : vector<4x12xf32>
    %cst_13 = arith.constant 0.000000e+00 : f32
    %cst_14 = arith.constant 6.000000e+00 : f32
    %33 = vector.broadcast %cst_13 : f32 to vector<4x12xf32>
    %34 = arith.maximumf %33, %32 : vector<4x12xf32>
    %35 = vector.broadcast %cst_14 : f32 to vector<4x12xf32>
    %36 = arith.minimumf %35, %34 : vector<4x12xf32>
    %37 = arith.mulf %30, %36 : vector<4x12xf32>
    %cst_15 = arith.constant 0.166666672 : f32
    %38 = vector.broadcast %cst_15 : f32 to vector<4x12xf32>
    %39 = arith.mulf %37, %38 : vector<4x12xf32>
    %c0_16 = arith.constant 0 : index
    %c0_17 = arith.constant 0 : index
    %40 = vector.load %arg5[%c0_16, %c0_17] : memref<16x4xf32, #tpu.memory_space<vmem>>, vector<16x4xf32>
    %cst_18 = arith.constant dense<0.000000e+00> : vector<16x12xf32>
    %41 = tpu.matmul %40, %39, %cst_18 {dimension_numbers = #tpu.dot_dimension_numbers<[1], [0], [0], [1], [0, 0, 1, 1], [], []>} : vector<16x4xf32>, vector<4x12xf32>, vector<16x12xf32> -> vector<16x12xf32>
    %42 = arith.addf %0, %41 : vector<16x12xf32>
    %c0_19 = arith.constant 0 : index
    %c0_20 = arith.constant 0 : index
    %43 = vector.load %arg6[%c0_19, %c0_20] : memref<1x12xf32, #tpu.memory_space<vmem>>, vector<1x12xf32>
    %44 = vector.broadcast %43 : vector<1x12xf32> to vector<16x12xf32>
    %45 = arith.mulf %0, %44 : vector<16x12xf32>
    %c0_21 = arith.constant 0 : index
    %c0_22 = arith.constant 0 : index
    %46 = vector.load %arg7[%c0_21, %c0_22] : memref<1x12xf32, #tpu.memory_space<vmem>>, vector<1x12xf32>
    %47 = vector.broadcast %46 : vector<1x12xf32> to vector<16x12xf32>
    %48 = arith.mulf %42, %47 : vector<16x12xf32>
    %49 = arith.addf %45, %48 : vector<16x12xf32>
    %cst_23 = arith.constant dense<0.000000e+00> : vector<16xf32>
    %50 = vector.multi_reduction <add>, %49, %cst_23 [1] : vector<16x12xf32> to vector<16xf32>
    %51 = vector.shape_cast %50 : vector<16xf32> to vector<16x1xf32>
    %c0_24 = arith.constant 0 : index
    %52 = memref.load %arg8[%c0_24] : memref<1xf32, #tpu.memory_space<smem>>
    %53 = vector.broadcast %52 : f32 to vector<16x1xf32>
    %54 = arith.addf %51, %53 : vector<16x1xf32>
    %c0_25 = arith.constant 0 : index
    %c0_26 = arith.constant 0 : index
    %55 = vector.load %arg9[%c0_25, %c0_26] : memref<16x1xf32, #tpu.memory_space<vmem>>, vector<16x1xf32>
    tpu.vector_store %arg9[%c0_25, %c0_26], %54 {strides = array<i32>} : memref<16x1xf32, #tpu.memory_space<vmem>>, vector<16x1xf32>,
    return
  }
  func.func @transform_0(%arg0: i32) -> (i32, i32) {
    %c0_i32 = arith.constant 0 : i32
    %c0_i32_0 = arith.constant 0 : i32
    %c0_i32_1 = arith.constant 0 : i32
    return %c0_i32, %c0_i32_0 : i32, i32
  }
  func.func @transform_1(%arg0: i32) -> (i32, i32) {
    %c0_i32 = arith.constant 0 : i32
    %c0_i32_0 = arith.constant 0 : i32
    %c0_i32_1 = arith.constant 0 : i32
    return %c0_i32, %c0_i32_0 : i32, i32
  }
  func.func @transform_2(%arg0: i32) -> (i32, i32) {
    %c0_i32 = arith.constant 0 : i32
    %c0_i32_0 = arith.constant 0 : i32
    %c0_i32_1 = arith.constant 0 : i32
    return %c0_i32, %c0_i32_0 : i32, i32
  }
  func.func @transform_3(%arg0: i32) -> (i32, i32) {
    %c0_i32 = arith.constant 0 : i32
    %c0_i32_0 = arith.constant 0 : i32
    %c0_i32_1 = arith.constant 0 : i32
    return %c0_i32, %c0_i32_0 : i32, i32
  }
  func.func @transform_4(%arg0: i32) -> (i32, i32) {
    %c0_i32 = arith.constant 0 : i32
    %c0_i32_0 = arith.constant 0 : i32
    %c0_i32_1 = arith.constant 0 : i32
    return %c0_i32, %c0_i32_0 : i32, i32
  }
  func.func @transform_5(%arg0: i32) -> (i32, i32) {
    %c0_i32 = arith.constant 0 : i32
    %c0_i32_0 = arith.constant 0 : i32
    %c0_i32_1 = arith.constant 0 : i32
    return %c0_i32, %c0_i32_0 : i32, i32
  }
  func.func @transform_6(%arg0: i32) -> (i32, i32) {
    %c0_i32 = arith.constant 0 : i32
    %c0_i32_0 = arith.constant 0 : i32
    %c0_i32_1 = arith.constant 0 : i32
    return %c0_i32, %c0_i32_0 : i32, i32
  }
  func.func @transform_7(%arg0: i32) -> i32 {
    %c0_i32 = arith.constant 0 : i32
    %c0_i32_0 = arith.constant 0 : i32
    return %c0_i32 : i32
  }
  func.func @transform_8(%arg0: i32) -> (i32, i32) {
    %c0_i32 = arith.constant 0 : i32
    %c0_i32_0 = arith.constant 0 : i32
    %c0_i32_1 = arith.constant 0 : i32
    return %c0_i32, %c0_i32_0 : i32, i32
  }
}

</mosaic_0001>

<llo_original>
// kernel: tpu_custom_call.1
$region0: #{tpu_custom_call.1}
  #allocation0 [shape = 'u32[]', space=smem, size = 0x4, offset = 0x4, fixed_abs, tag = 'smem constant byte address 0x4 - core index']
  #allocation1 [shape = 'u32[144,128]{1,0:T(1,128)}', space=vmem, size = 0x12000, scoped, tag = 'internal scratch']
  #allocation2 [shape = 'f32[1]{0:T(128)S(6)}', space=smem, size = 0x200, scoped, tag = 'scoped memory for tpu_custom_call.1']
  %s0 = inlined_call_operand.vmem [shape: f32[16,12], index: 0, kind: input, shape index: {}]
  %s1 = inlined_call_operand.hbm [shape: f32[16,12], index: 1, kind: input, shape index: {}]
  %s2 = inlined_call_operand.hbm [shape: f32[16,12], index: 2, kind: input, shape index: {}]
  %s3 = inlined_call_operand.vmem [shape: f32[4,16], index: 3, kind: input, shape index: {}]
  %s4 = inlined_call_operand.vmem [shape: f32[16,4], index: 4, kind: input, shape index: {}]
  %s5 = inlined_call_operand.vmem [shape: f32[1,12], index: 5, kind: input, shape index: {}]
  %s6 = inlined_call_operand.vmem [shape: f32[1,12], index: 6, kind: input, shape index: {}]
  %s7 = inlined_call_operand.<no memory space> [shape: f32[1], index: 7, kind: input, shape index: {}]
  %s8 = inlined_call_operand.vmem [shape: f32[16,1], index: 8, kind: output, shape index: {}]
  %s9 = sld [smem:[#allocation0]]
  $region50: #{tpu_custom_call.1} parent=0
    _
  %s11 = ssub.s32 1, %s9
  %s12 = scalar_select 0, %s11, %s9
  %13 = sst [smem:[#allocation2]] %s7
  $region1: #{tpu_custom_call.1} parent=0
    #allocation3 [shape = 'u8[8192]{0}', space=vmem, size = 0x2000, scoped, tag = 'input window, operand 1, single buffered']
    #allocation4 [shape = 's32[1]{0}', space=sflag, size = 0x4, scoped, tag = 'scoped memory for tpu_custom_call.1']
    #allocation5 [shape = 'u8[8192]{0}', space=vmem, size = 0x2000, scoped, tag = 'input window, operand 2, single buffered']
    #allocation6 [shape = 's32[1]{0}', space=sflag, size = 0x4, scoped, tag = 'scoped memory for tpu_custom_call.1']
    %14 = vsyncpa [#allocation4], 0
    %15 = vsyncpa [#allocation6], 0
    // Predicated region
    $region2: #{tpu_custom_call.1} parent=1 // pred_check
      _
    $region3: #{tpu_custom_call.1} parent=1 // pred_check_branch
      %17 = sbr.rel (0) target = $region5
    $region4: #{tpu_custom_call.1} parent=1 // pred_region
      _
    $region5: #{tpu_custom_call.1} parent=1 // pred_fallthru
      _
    // Predicated region
    $region6: #{tpu_custom_call.1} parent=1 // pred_check
      _
    $region7: #{tpu_custom_call.1} parent=1 // pred_check_branch
      %19 = sbr.rel (0) target = $region9
    $region8: #{tpu_custom_call.1} parent=1 // pred_region
      %s21 = ssub.s32 256, 256
      %22 = vsyncadd [#allocation4], %s21
      %s23 = sshll.u32 [#allocation3], 4
      %s24 = int_to_ptr.vmem [resolvable:$true] %s23
      %29 = dma.hbm_to_vmem [thread:$0]  %s1, 256, %s24, [#allocation4], 128, 128, 8
    $region9: #{tpu_custom_call.1} parent=1 // pred_fallthru
      _
    // Predicated region
    $region10: #{tpu_custom_call.1} parent=1 // pred_check
      _
    $region11: #{tpu_custom_call.1} parent=1 // pred_check_branch
      %31 = sbr.rel (0) target = $region13
    $region12: #{tpu_custom_call.1} parent=1 // pred_region
      %s33 = ssub.s32 256, 256
      %34 = vsyncadd [#allocation6], %s33
      %s35 = sshll.u32 [#allocation5], 4
      %s36 = int_to_ptr.vmem [resolvable:$true] %s35
      %41 = dma.hbm_to_vmem [thread:$0]  %s2, 256, %s36, [#allocation6], 128, 128, 8
    $region13: #{tpu_custom_call.1} parent=1 // pred_fallthru
      _
    // Predicated region
    $region14: #{tpu_custom_call.1} parent=1 // pred_check
      _
    $region15: #{tpu_custom_call.1} parent=1 // pred_check_branch
      %43 = sbr.rel (0) target = $region17
    $region16: #{tpu_custom_call.1} parent=1 // pred_region
      _
    $region17: #{tpu_custom_call.1} parent=1 // pred_fallthru
      _
    // Predicated region
    $region18: #{tpu_custom_call.1} parent=1 // pred_check
      _
    $region19: #{tpu_custom_call.1} parent=1 // pred_check_branch
      %45 = sbr.rel (0) target = $region21
    $region20: #{tpu_custom_call.1} parent=1 // pred_region
      _
    $region21: #{tpu_custom_call.1} parent=1 // pred_fallthru
      _
    // Predicated region
    $region22: #{tpu_custom_call.1} parent=1 // pred_check
      _
    $region23: #{tpu_custom_call.1} parent=1 // pred_check_branch
      %47 = sbr.rel (0) target = $region25
    $region24: #{tpu_custom_call.1} parent=1 // pred_region
      _
    $region25: #{tpu_custom_call.1} parent=1 // pred_fallthru
      _
    // Predicated region
    $region26: #{tpu_custom_call.1} parent=1 // pred_check
      _
    $region27: #{tpu_custom_call.1} parent=1 // pred_check_branch
      %49 = sbr.rel (0) target = $region29
    $region28: #{tpu_custom_call.1} parent=1 // pred_region
      _
    $region29: #{tpu_custom_call.1} parent=1 // pred_fallthru
      _
    // Predicated region
    $region30: #{tpu_custom_call.1} parent=1 // pred_check
      _
    $region31: #{tpu_custom_call.1} parent=1 // pred_check_branch
      %51 = sbr.rel (0) target = $region33
    $region32: #{tpu_custom_call.1} parent=1 // pred_region
      _
    $region33: #{tpu_custom_call.1} parent=1 // pred_fallthru
      _
    // Predicated region
    $region34: #{tpu_custom_call.1} parent=1 // pred_check
      _
    $region35: #{tpu_custom_call.1} parent=1 // pred_check_branch
      %53 = sbr.rel (0) target = $region37
    $region36: #{tpu_custom_call.1} parent=1 // pred_region
      %54 = dma.done [#allocation4], 256
    $region37: #{tpu_custom_call.1} parent=1 // pred_fallthru
      _
    // Predicated region
    $region38: #{tpu_custom_call.1} parent=1 // pred_check
      _
    $region39: #{tpu_custom_call.1} parent=1 // pred_check_branch
      %56 = sbr.rel (0) target = $region41
    $region40: #{tpu_custom_call.1} parent=1 // pred_region
      %57 = dma.done [#allocation6], 256
    $region41: #{tpu_custom_call.1} parent=1 // pred_fallthru
      _
    %v58 = vld [vmem:[%s0] sm:$0xff]
    %v59 = vld [vmem:[%s0 + $0x8] sm:$0xff]
    %vm60 = vcmask 97280
    %v61 = vsel %vm60, %v58, 0.0
    %v62 = vsel %vm60, %v59, 0.0
    %v63 = vadd.f32 %v61, %v62
    %64 = vadd.xlane.f32.xlu0 %v63
    %v65 = vpop.xlane.xlu0 %64
    %v66 = vrot.slane %v65, 4
    %v67 = vadd.f32 %v65, %v66
    %v68 = vrot.slane %v67, 2
    %v69 = vadd.f32 %v67, %v68
    %v70 = vrot.slane %v69, 1
    %v71 = vadd.f32 %v69, %v70
    %s72 = vtos %v71
    %v73 = vstv %s72
    %v74 = vrcp.pop 192.0
    %v75 = vmul.f32 %v73, %v74
    %v76 = vsub.f32 %v58, %v75
    %v77 = vsub.f32 %v59, %v75
    %v78 = vmul.f32 %v76, %v76
    %v79 = vmul.f32 %v77, %v77
    %v80 = vsel %vm60, %v78, 0.0
    %v81 = vsel %vm60, %v79, 0.0
    %v82 = vadd.f32 %v80, %v81
    %83 = vadd.xlane.f32.xlu0 %v82
    %v84 = vpop.xlane.xlu0 %83
    %v85 = vrot.slane %v84, 4
    %v86 = vadd.f32 %v84, %v85
    %v87 = vrot.slane %v86, 2
    %v88 = vadd.f32 %v86, %v87
    %v89 = vrot.slane %v88, 1
    %v90 = vadd.f32 %v88, %v89
    %s91 = vtos %v90
    %v92 = vstv %s91
    %v93 = vmul.f32 %v92, %v74
    %v94 = vadd.f32 %v93, 1e-05
    %v95 = vrsqrt.pop %v94
    %v96 = vmul.f32 %v76, %v95
    %v97 = vmul.f32 %v77, %v95
    %v98 = vld [vmem:[#allocation3] sm:$0xff]
    %v99 = vld [vmem:[#allocation3 + $0x8] sm:$0xff]
    %v100 = vmul.f32 %v96, %v98
    %v101 = vmul.f32 %v97, %v99
    %v102 = vld [vmem:[#allocation5] sm:$0xff]
    %v103 = vld [vmem:[#allocation5 + $0x8] sm:$0xff]
    %v104 = vadd.f32 %v100, %v102
    %v105 = vadd.f32 %v101, %v103
    %v106 = vld [vmem:[%s3] sm:$0xf]
    %vm107 = vcmask 130048
    %v109 = vsel %vm107, %v106, 0
    %111 = vmatprep.subr.mxu0 0.0
    %112 = vmatpush1.msra.mxu0 %v104
    %113 = vmatprep.subr.mxu0 0.0
    %114 = vmatpush1.msra.mxu0 %v105
    %115 = vmatprep.subr.mxu0 0.0
    %116 = vmatpush1.msra.mxu0 0.0
    %117 = vmatprep.subr.mxu0 0.0
    %118 = vmatpush1.msra.mxu0 0.0
    %119 = vmatprep.subr.mxu0 0.0
    %120 = vmatpush1.msra.mxu0 0.0
    %121 = vmatprep.subr.mxu0 0.0
    %122 = vmatpush1.msra.mxu0 0.0
    %123 = vmatprep.subr.mxu0 0.0
    %124 = vmatpush1.msra.mxu0 0.0
    %125 = vmatprep.subr.mxu0 0.0
    %126 = vmatpush1.msra.mxu0 0.0
    %127 = vmatprep.subr.mxu0 0.0
    %128 = vmatpush1.msra.mxu0 0.0
    %129 = vmatprep.subr.mxu0 0.0
    %130 = vmatpush1.msra.mxu0 0.0
    %131 = vmatprep.subr.mxu0 0.0
    %132 = vmatpush1.msra.mxu0 0.0
    %133 = vmatprep.subr.mxu0 0.0
    %134 = vmatpush1.msra.mxu0 0.0
    %135 = vmatprep.subr.mxu0 0.0
    %136 = vmatpush1.msra.mxu0 0.0
    %137 = vmatprep.subr.mxu0 0.0
    %138 = vmatpush1.msra.mxu0 0.0
    %139 = vmatprep.subr.mxu0 0.0
    %140 = vmatpush1.msra.mxu0 0.0
    %141 = vmatprep.subr.mxu0 0.0
    %142 = vmatpush1.msra.mxu0 0.0
    %143 = vmatprep.subr.mxu0 0.0
    %144 = vmatpush1.msra.mxu0 0.0
    %145 = vmatprep.subr.mxu0 0.0
    %146 = vmatpush1.msra.mxu0 0.0
    %147 = vmatprep.subr.mxu0 0.0
    %148 = vmatpush1.msra.mxu0 0.0
    %149 = vmatprep.subr.mxu0 0.0
    %150 = vmatpush1.msra.mxu0 0.0
    %151 = vmatprep.subr.mxu0 0.0
    %152 = vmatpush1.msra.mxu0 0.0
    %153 = vmatprep.subr.mxu0 0.0
    %154 = vmatpush1.msra.mxu0 0.0
    %155 = vmatprep.subr.mxu0 0.0
    %156 = vmatpush1.msra.mxu0 0.0
    %157 = vmatprep.subr.mxu0 0.0
    %158 = vmatpush1.msra.mxu0 0.0
    %159 = vmatprep.subr.mxu0 0.0
    %160 = vmatpush1.msra.mxu0 0.0
    %161 = vmatprep.subr.mxu0 0.0
    %162 = vmatpush1.msra.mxu0 0.0
    %163 = vmatprep.subr.mxu0 0.0
    %164 = vmatpush1.msra.mxu0 0.0
    %165 = vmatprep.subr.mxu0 0.0
    %166 = vmatpush1.msra.mxu0 0.0
    %167 = vmatprep.subr.mxu0 0.0
    %168 = vmatpush1.msra.mxu0 0.0
    %169 = vmatprep.subr.mxu0 0.0
    %170 = vmatpush1.msra.mxu0 0.0
    %171 = vmatprep.subr.mxu0 0.0
    %172 = vmatpush1.msra.mxu0 0.0
    %173 = vmatprep.subr.mxu0 0.0
    %174 = vmatpush1.msra.mxu0 0.0
    %175 = vmatprep.mubr.f32.mxu0 0.0
    %176 = vmatmul.mubr.f32.gmra.mrb[0].mxu0 %v109
    %v177 = vpop.f32.mrb[0].mxu0
    %v178 = vadd.f32 0.0, %v177
    %v179 = vpop.f32.mrb[0].mxu0
    %180 = vdwg.mxu0
    %v181 = vadd.f32 %v178, 3.0
    %v182 = vmax.f32 %v181, 0.0
    %v183 = vmin.f32 %v182, 6.0
    %v184 = vmul.f32 %v178, %v183
    %v185 = vmul.f32 %v184, 0.16666667
    %v186 = vld [vmem:[%s4] sm:$0xff]
    %v187 = vld [vmem:[%s4 + $0x8] sm:$0xff]
    %vm188 = vcmask 31744
    %v190 = vsel %vm188, %v186, 0
    %v193 = vsel %vm188, %v187, 0
    %vm195 = vcmask 1043456
    %v197 = vsel %vm195, %v185, 0
    %199 = vmatprep.subr.mxu0 0.0
    %200 = vmatpush1.msra.mxu0 %v197
    %201 = vmatprep.subr.mxu0 0.0
    %202 = vmatpush1.msra.mxu0 0.0
    %203 = vmatprep.subr.mxu0 0.0
    %204 = vmatpush1.msra.mxu0 0.0
    %205 = vmatprep.subr.mxu0 0.0
    %206 = vmatpush1.msra.mxu0 0.0
    %207 = vmatprep.subr.mxu0 0.0
    %208 = vmatpush1.msra.mxu0 0.0
    %209 = vmatprep.subr.mxu0 0.0
    %210 = vmatpush1.msra.mxu0 0.0
    %211 = vmatprep.subr.mxu0 0.0
    %212 = vmatpush1.msra.mxu0 0.0
    %213 = vmatprep.subr.mxu0 0.0
    %214 = vmatpush1.msra.mxu0 0.0
    %215 = vmatprep.subr.mxu0 0.0
    %216 = vmatpush1.msra.mxu0 0.0
    %217 = vmatprep.subr.mxu0 0.0
    %218 = vmatpush1.msra.mxu0 0.0
    %219 = vmatprep.subr.mxu0 0.0
    %220 = vmatpush1.msra.mxu0 0.0
    %221 = vmatprep.subr.mxu0 0.0
    %222 = vmatpush1.msra.mxu0 0.0
    %223 = vmatprep.subr.mxu0 0.0
    %224 = vmatpush1.msra.mxu0 0.0
    %225 = vmatprep.subr.mxu0 0.0
    %226 = vmatpush1.msra.mxu0 0.0
    %227 = vmatprep.subr.mxu0 0.0
    %228 = vmatpush1.msra.mxu0 0.0
    %229 = vmatprep.subr.mxu0 0.0
    %230 = vmatpush1.msra.mxu0 0.0
    %231 = vmatprep.subr.mxu0 0.0
    %232 = vmatpush1.msra.mxu0 0.0
    %233 = vmatprep.subr.mxu0 0.0
    %234 = vmatpush1.msra.mxu0 0.0
    %235 = vmatprep.subr.mxu0 0.0
    %236 = vmatpush1.msra.mxu0 0.0
    %237 = vmatprep.subr.mxu0 0.0
    %238 = vmatpush1.msra.mxu0 0.0
    %239 = vmatprep.subr.mxu0 0.0
    %240 = vmatpush1.msra.mxu0 0.0
    %241 = vmatprep.subr.mxu0 0.0
    %242 = vmatpush1.msra.mxu0 0.0
    %243 = vmatprep.subr.mxu0 0.0
    %244 = vmatpush1.msra.mxu0 0.0
    %245 = vmatprep.subr.mxu0 0.0
    %246 = vmatpush1.msra.mxu0 0.0
    %247 = vmatprep.subr.mxu0 0.0
    %248 = vmatpush1.msra.mxu0 0.0
    %249 = vmatprep.subr.mxu0 0.0
    %250 = vmatpush1.msra.mxu0 0.0
    %251 = vmatprep.subr.mxu0 0.0
    %252 = vmatpush1.msra.mxu0 0.0
    %253 = vmatprep.subr.mxu0 0.0
    %254 = vmatpush1.msra.mxu0 0.0
    %255 = vmatprep.subr.mxu0 0.0
    %256 = vmatpush1.msra.mxu0 0.0
    %257 = vmatprep.subr.mxu0 0.0
    %258 = vmatpush1.msra.mxu0 0.0
    %259 = vmatprep.subr.mxu0 0.0
    %260 = vmatpush1.msra.mxu0 0.0
    %261 = vmatprep.subr.mxu0 0.0
    %262 = vmatpush1.msra.mxu0 0.0
    %263 = vmatprep.mubr.f32.mxu0 0.0
    %264 = vmatmul.mubr.f32.gmra.mrb[0].mxu0 %v190
    %v265 = vpop.f32.mrb[0].mxu0
    %v266 = vadd.f32 0.0, %v265
    %v267 = vpop.f32.mrb[0].mxu0
    %268 = vmatprep.mubr.f32.mxu0 0.0
    %269 = vmatmul.mubr.f32.gmra.mrb[0].mxu0 %v193
    %v270 = vpop.f32.mrb[0].mxu0
    %v271 = vadd.f32 0.0, %v270
    %v272 = vpop.f32.mrb[0].mxu0
    %273 = vdwg.mxu0
    %v274 = vadd.f32 %v58, %v266
    %v275 = vadd.f32 %v59, %v271
    %v276 = vld [vmem:[%s5] sm:$0x1]
    %v278 = vlaneseq
    %v279 = vshrl.u32 %v278, 7
    %v280 = vsub.s32 0, %v279
    %v281 = vrot.slane %v276, %v280
    %v283 = vmul.f32 %v58, %v281
    %v284 = vmul.f32 %v59, %v281
    %v285 = vld [vmem:[%s6] sm:$0x1]
    %v287 = vlaneseq
    %v288 = vshrl.u32 %v287, 7
    %v289 = vsub.s32 0, %v288
    %v290 = vrot.slane %v285, %v289
    %v292 = vmul.f32 %v274, %v290
    %v293 = vmul.f32 %v275, %v290
    %v294 = vadd.f32 %v283, %v292
    %v295 = vadd.f32 %v284, %v293
    %v296 = vsel %vm60, %v294, 0.0
    %297 = vadd.xlane.f32.xlu0 %v296
    %v298 = vpop.xlane.xlu0 %297
    %v299 = vsel %vm60, %v295, 0.0
    %300 = vadd.xlane.f32.xlu0 %v299
    %v301 = vpop.xlane.xlu0 %300
    %s302 = sld [smem:[#allocation2]]
    %v303 = vstv %s302
    %v304 = vadd.f32 %v298, %v303
    %v305 = vadd.f32 %v301, %v303
    %vm306 = vcmask 7168
    %307 = vst.msk [vmem:[%s8] sm:$0xff] %vm306, %v304
    %308 = vst.msk [vmem:[%s8 + $0x8] sm:$0xff] %vm306, %v305
    // Predicated region
    $region42: #{tpu_custom_call.1} parent=1 // pred_check
      _
    $region43: #{tpu_custom_call.1} parent=1 // pred_check_branch
      %310 = sbr.rel (0) target = $region45
    $region44: #{tpu_custom_call.1} parent=1 // pred_region
      _
    $region45: #{tpu_custom_call.1} parent=1 // pred_fallthru
      _
    // Predicated region
    $region46: #{tpu_custom_call.1} parent=1 // pred_check
      _
    $region47: #{tpu_custom_call.1} parent=1 // pred_check_branch
      %312 = sbr.rel (0) target = $region49
    $region48: #{tpu_custom_call.1} parent=1 // pred_region
      _
    $region49: #{tpu_custom_call.1} parent=1 // pred_fallthru
      _
    %313 = vsyncpa [#allocation4], 1
    %314 = vsyncpa [#allocation6], 1

</llo_original>
